<compile_context>
chip_gen: v6e
topology: v6e:2x2x1
jax: 0.10.0
libtpu: 0.0.40
codegen_flags: <defaults>
</compile_context>

<pallas_src>
import math

import jax
import jax.numpy as jnp
from jax.experimental import pallas as pl
from jax.experimental.pallas import tpu as pltpu


_DEFAULT_TILE_BYTES = 8 * 1024 * 1024  # ~8 MiB per DMA (review: v6e/v7x sweet spot)


def _choose_slab(total: int):
    """Factor `total` elements into a lane-dense (rows, cols) slab (cols % 128 == 0)."""
    for cols in (1024, 512, 256, 128):
        if total % cols == 0:
            return total // cols, cols
    return None


def _make_hbm_copy_kernel(rows: int, cols: int, tr: int):
    """Tiled HBM->HBM copy of a (rows, cols) slab; tr rows per DMA, 2 DMAs in flight."""
    n_full = rows // tr
    rem = rows - n_full * tr

    def kernel(x_hbm, o_hbm, sem):
        def tile_copy(t, slot):
            # Row-tile t of the slab.  Every full tile has the same byte count,
            # so a reconstructed descriptor is a valid wait handle for `slot`.
            return pltpu.make_async_copy(
                x_hbm.at[pl.ds(t * tr, tr), :],
                o_hbm.at[pl.ds(t * tr, tr), :],
                sem.at[slot],
            )

        # Prime: first tile's DMA goes in flight immediately.
        tile_copy(0, 0).start()

        if n_full > 1:
            @pl.loop(1, n_full)
            def _(t):
                slot = t & 1
                tile_copy(t, slot).start()          # keep 2 DMAs outstanding
                tile_copy(t - 1, 1 - slot).wait()   # retire the older one

        # Drain the last full tile.
        tile_copy(n_full - 1, (n_full - 1) & 1).wait()

        if rem > 0:
            # Tail rows (different byte count -> handled outside the slot loop).
            tail = pltpu.make_async_copy(
                x_hbm.at[pl.ds(n_full * tr, rem), :],
                o_hbm.at[pl.ds(n_full * tr, rem), :],
                sem.at[0],
            )
            tail.start()
            tail.wait()

    return kernel


def _flatten_copy_pallas(x_slab: jax.Array, tile_bytes: int) -> jax.Array:
    rows, cols = x_slab.shape
    itemsize = jnp.dtype(x_slab.dtype).itemsize
    row_bytes = cols * itemsize
    tr = min(rows, max(1, tile_bytes // row_bytes))
    kernel = _make_hbm_copy_kernel(rows, cols, tr)
    return pl.pallas_call(
        kernel,
        out_shape=jax.ShapeDtypeStruct((rows, cols), x_slab.dtype),
        grid=(1,),
        in_specs=[pl.BlockSpec(memory_space=pl.ANY)],   # raw HBM ref, no auto-DMA
        out_specs=pl.BlockSpec(memory_space=pl.ANY),
        scratch_shapes=[pltpu.SemaphoreType.DMA((2,))],
        compiler_params=pltpu.CompilerParams(
            dimension_semantics=("arbitrary",),
            has_side_effects=True,
        ),
        cost_estimate=pl.CostEstimate(
            flops=0, transcendentals=0,
            bytes_accessed=2 * rows * cols * itemsize),
    )(x_slab)


def flatten_forward(x: jax.Array, *, materialize: bool = False,
                    tile_bytes: int = _DEFAULT_TILE_BYTES) -> jax.Array:
    """torch Flatten().forward(x) == x.view(x.size(0), -1).

    Default: pure metadata reshape (optimal on every TPU generation — zero
    HBM traffic, no kernel).  materialize=True: physically copy the bytes via
    the tiled HBM->HBM DMA Pallas kernel above.
    """
    n = x.shape[0]
    flat = math.prod(x.shape[1:])  # == 1 for 1-D input

    if not materialize:
        # Flatten is pure layout metadata; this IS the optimal implementation.
        return x.reshape(n, flat)

    total = n * flat
    slab = _choose_slab(total)
    if slab is None:
        rows, cols = n, flat          # any 2-D shape is fine for HBM->HBM DMA
    else:
        rows, cols = slab             # lane-dense factorization of the same bytes
    x_slab = x.reshape(rows, cols)    # zero-cost row-major relayout
    out = _flatten_copy_pallas(x_slab, tile_bytes)
    return out.reshape(n, flat)       # zero-cost reshape back to (N, -1)


if __name__ == "__main__":
    key = jax.random.PRNGKey(0)

    # Small NCHW input: batch=2, channels=4, spatial=16x16 -> flat dim 1024.
    x = jax.random.normal(key, (2, 4, 16, 16), dtype=jnp.float32)
    ref = x.reshape(x.shape[0], -1)

    # 1) Production path: pure metadata reshape (no kernel, no HBM traffic).
    out_meta = jax.block_until_ready(flatten_forward(x))

    # 2) Materializing Pallas kernel, default tile (single big DMA at this size).
    out_copy = jax.block_until_ready(flatten_forward(x, materialize=True))

    # 3) Materializing kernel with a tiny tile so the double-buffered DMA loop
    #    (start current / wait previous / drain) is exercised.
    out_tiled = jax.block_until_ready(
        flatten_forward(x, materialize=True, tile_bytes=2048))

    # 4) Awkward shape (element count not divisible by 128) -> (N, flat)
    #    fallback slab plus a tail DMA of a different size.
    x2 = jax.random.normal(jax.random.PRNGKey(0), (3, 5, 7), dtype=jnp.float32)
    ref2 = x2.reshape(3, -1)
    out2 = jax.block_until_ready(
        flatten_forward(x2, materialize=True, tile_bytes=300))

    for out in (out_meta, out_copy, out_tiled):
        assert out.shape == (2, 4 * 16 * 16), out.shape
        assert out.dtype == x.dtype
        assert jnp.array_equal(out, ref)

    assert out2.shape == (3, 35), out2.shape
    assert jnp.array_equal(out2, ref2)

    print("KERNEL_OK")
</pallas_src>

<mosaic_0001>
module attributes {stable_mosaic.version = 11 : i64} {
  func.func @kernel(%arg0: i32, %arg1: memref<2x1024xf32, #tpu.memory_space<any>>, %arg2: memref<2x1024xf32, #tpu.memory_space<any>>, %arg3: memref<2x!tpu.dma_semaphore, #tpu.memory_space<semaphore_mem>>) attributes {dimension_semantics = [#tpu.dimension_semantics<arbitrary>], iteration_bounds = array<i64: 1>, scalar_prefetch = 0 : i64, scratch_operands = 1 : i64, tpu.core_type = #tpu.core_type<tc>, window_params = [{}, {}]} {
    %c0_i32 = arith.constant 0 : i32
    %c0_i32_0 = arith.constant 0 : i32
    %c0_i32_1 = arith.constant 0 : i32
    %0 = tpu.memref_slice %arg1[%c0_i32_0, %c0_i32_1] : memref<2x1024xf32, #tpu.memory_space<any>> -> memref<2x1024xf32, #tpu.memory_space<any>>
    %c0_i32_2 = arith.constant 0 : i32
    %c0_i32_3 = arith.constant 0 : i32
    %1 = tpu.memref_slice %arg2[%c0_i32_2, %c0_i32_3] : memref<2x1024xf32, #tpu.memory_space<any>> -> memref<2x1024xf32, #tpu.memory_space<any>>
    %2 = tpu.memref_slice %arg3[%c0_i32] : memref<2x!tpu.dma_semaphore, #tpu.memory_space<semaphore_mem>> -> memref<1x!tpu.dma_semaphore, #tpu.memory_space<semaphore_mem>>
    %3 = tpu.memref_squeeze %2 : memref<1x!tpu.dma_semaphore, #tpu.memory_space<semaphore_mem>> -> memref<!tpu.dma_semaphore, #tpu.memory_space<semaphore_mem>>
    tpu.enqueue_dma source(%0 : memref<2x1024xf32, #tpu.memory_space<any>>) target(%1 : memref<2x1024xf32, #tpu.memory_space<any>>) target_semaphore(%3 : memref<!tpu.dma_semaphore, #tpu.memory_space<semaphore_mem>>)
    %c0_i32_4 = arith.constant 0 : i32
    %c0_i32_5 = arith.constant 0 : i32
    %c0_i32_6 = arith.constant 0 : i32
    %4 = tpu.memref_slice %arg1[%c0_i32_5, %c0_i32_6] : memref<2x1024xf32, #tpu.memory_space<any>> -> memref<2x1024xf32, #tpu.memory_space<any>>
    %c0_i32_7 = arith.constant 0 : i32
    %c0_i32_8 = arith.constant 0 : i32
    %5 = tpu.memref_slice %arg2[%c0_i32_7, %c0_i32_8] : memref<2x1024xf32, #tpu.memory_space<any>> -> memref<2x1024xf32, #tpu.memory_space<any>>
    %6 = tpu.memref_slice %arg3[%c0_i32_4] : memref<2x!tpu.dma_semaphore, #tpu.memory_space<semaphore_mem>> -> memref<1x!tpu.dma_semaphore, #tpu.memory_space<semaphore_mem>>
    %7 = tpu.memref_squeeze %6 : memref<1x!tpu.dma_semaphore, #tpu.memory_space<semaphore_mem>> -> memref<!tpu.dma_semaphore, #tpu.memory_space<semaphore_mem>>
    tpu.wait_dma2 semaphore(%7 : memref<!tpu.dma_semaphore, #tpu.memory_space<semaphore_mem>>) src(%4 : memref<2x1024xf32, #tpu.memory_space<any>>) dst(%5 : memref<2x1024xf32, #tpu.memory_space<any>>)
    return
  }
}

</mosaic_0001>

<llo_original>
// kernel: tpu_custom_call.1
$region0: #{tpu_custom_call.1}
  #allocation0 [shape = 'u32[]', space=smem, size = 0x4, offset = 0x4, fixed_abs, tag = 'smem constant byte address 0x4 - core index']
  #allocation1 [shape = 'u32[144,128]{1,0:T(1,128)}', space=vmem, size = 0x12000, scoped, tag = 'internal scratch']
  #allocation2 [shape = 's32[2]{0}', space=sflag, size = 0x8, scoped, tag = 'scratch operand']
  #allocation3 [shape = 's32[]', space=sflag, size = 0x4, offset = 0, fixed_abs, tag = 'sflag constant byte address 0x0 - dummy sync flag']
  #allocation4 [shape = 'u32[0]{0}', space=smem, size = 0, offset = 0, fixed_abs, tag = 'smem constant byte address 0x0 - null']
  %s0 = inlined_call_operand.hbm [shape: f32[2,1024], index: 0, kind: input, shape index: {}]
  %s1 = inlined_call_operand.hbm [shape: f32[2,1024], index: 1, kind: output, shape index: {}]
  %s2 = sld [smem:[#allocation0]]
  $region2: #{tpu_custom_call.1} parent=0
    _
  %s4 = ssub.s32 1, %s2
  %s5 = scalar_select 0, %s4, %s2
  %s7 = sshll.u32 1, 14
  %s8 = sxor.u32 4294967295, %s7
  %12 = dma.general %s0, 256, %s1, [#allocation2], 131072, [#allocation4], 0, 0
  %s13 = smul.u32 2, 1
  %s14 = smul.u32 %s13, 8
  %s15 = sshll.u32 %s14, 4
  %16 = dma.done [#allocation2], %s15
  %17 = vsyncmov [#allocation2]
  %s18 = vpop.sfrf %17
  %p19 = scmp.eq.s32.totalorder %s18, 0
  %p20 = pneg %p19
  %22 = shalt.err (%p20)
  %s23 = scalar_lea.sflag [#allocation2], 1
  %24 = vsyncmov %s23
  %s25 = vpop.sfrf %24
  %p26 = scmp.eq.s32.totalorder %s25, 0
  %p27 = pneg %p26
  %29 = shalt.err (%p27)

</llo_original>
